<compile_context>
chip_gen: v7x
topology: tpu7x:2x2x1
jax: 0.10.0
libtpu: 0.0.40
codegen_flags: <defaults>
</compile_context>

<pallas_src>
import functools

import numpy as np
import jax
import jax.numpy as jnp
from jax.experimental import pallas as pl
from jax.experimental.pallas import tpu as pltpu


# ---------------------------------------------------------------------------
# Fused kernel: conv(as matmul)+ReLU + maxpool(3,s=1,p=1) + classifier.
# Everything lives in the channel-major flattened layout (N, C*H*W), which is
# exactly flat_out = out.view(N, -1) of the PyTorch module, so it feeds fc1
# on the MXU unchanged (no NHWC intermediates, no transposes).
# ---------------------------------------------------------------------------
def _fused_kernel(H, W, C,
                  x_ref, cmat_ref, cb_ref, pmask_ref,
                  w1_ref, b1_ref, w2_ref, b2_ref,
                  out_ref):
    CHW = C * H * W

    # Conv2d(1->C, 3x3, stride 1, pad 1) + bias + ReLU as ONE small MXU matmul
    # against the precomputed banded conv matrix (zero padding folded in).
    x = x_ref[...]                                              # (N, H*W)
    conv = jnp.dot(x, cmat_ref[...],
                   preferred_element_type=jnp.float32) + cb_ref[...]
    relu = jnp.maximum(conv, 0.0)                               # (N, C*H*W)

    # MaxPool2d(kernel=3, stride=1, padding=1): 8 shift-and-max taps.
    # pltpu.roll is an XLU lane rotate; out-of-image / cross-channel-block
    # wrap-around lanes are zeroed by PREcomputed {0,1} masks.
    # INVARIANT: zero-fill is equivalent to -inf-fill only because `relu` >= 0
    # (post-ReLU) and the always-valid center tap is part of the max.
    pmask = pmask_ref[...]                                      # (8, C*H*W)
    pooled = relu
    k = 0
    for dy in (-1, 0, 1):
        for dx in (-1, 0, 1):
            if dy == 0 and dx == 0:
                continue
            s = dy * W + dx
            shifted = pltpu.roll(relu, (-s) % CHW, axis=1)
            pooled = jnp.maximum(pooled, shifted * pmask[k:k + 1, :])
            k += 1

    # NOTE: the reference module's SE branch (squeeze/excitation/scale_out)
    # does not feed final_out (flat_out is built from `out`, not scale_out),
    # so it is omitted here as dead code.

    # Classifier: Linear(C*H*W, fc2) + ReLU + Linear(fc2, out).
    h1 = jnp.maximum(jnp.dot(pooled, w1_ref[...],
                             preferred_element_type=jnp.float32) + b1_ref[...],
                     0.0)
    out_ref[...] = (jnp.dot(h1, w2_ref[...],
                            preferred_element_type=jnp.float32) + b2_ref[...])


def fused_forward(x_flat, pp, H, W, C):
    N, HW = x_flat.shape
    OUT = pp['fc2_b'].shape[1]

    # Batch tiled over a "parallel" grid axis (near-2x on v7x's two TCs when N
    # grows); weight index_maps are constant so weight blocks stay resident.
    tb = N if N < 8 else 8
    grid = (pl.cdiv(N, tb),)

    def batch_spec(cols):
        return pl.BlockSpec((tb, cols), lambda i: (i, 0))

    def const_spec(shape):
        nd = len(shape)
        return pl.BlockSpec(shape, lambda i, _nd=nd: (0,) * _nd)

    args = (x_flat, pp['conv_mat'], pp['conv_b'], pp['pool_mask'],
            pp['fc1_wt'], pp['fc1_b'], pp['fc2_wt'], pp['fc2_b'])
    in_specs = [batch_spec(HW)] + [const_spec(a.shape) for a in args[1:]]

    kern = functools.partial(_fused_kernel, H, W, C)
    return pl.pallas_call(
        kern,
        out_shape=jax.ShapeDtypeStruct((N, OUT), jnp.float32),
        grid=grid,
        in_specs=in_specs,
        out_specs=batch_spec(OUT),
        compiler_params=pltpu.CompilerParams(
            dimension_semantics=("parallel",)),
    )(*args)


# ---------------------------------------------------------------------------
# One-time parameter preparation.
# ---------------------------------------------------------------------------
def _build_conv_matrix(conv_w, conv_b, H, W):
    """Lower Conv2d(1->C, 3x3, stride 1, pad 1) to `x_flat @ mat + bias_row`.

    mat has shape (H*W, C*H*W); output lane q = c*H*W + h*W + w gathers input
    pixel (h+dy-1, w+dx-1) with weight conv_w[c, 0, dy, dx] (zero padding
    handled by simply omitting out-of-image taps)."""
    cw = np.asarray(conv_w, dtype=np.float32)        # (C, 1, 3, 3)
    cb = np.asarray(conv_b, dtype=np.float32)        # (C,)
    C = cw.shape[0]
    HW = H * W
    mat = np.zeros((HW, C * HW), np.float32)
    for c in range(C):
        for dy in range(3):
            for dx in range(3):
                wgt = cw[c, 0, dy, dx]
                for h in range(H):
                    hh = h + dy - 1
                    if not 0 <= hh < H:
                        continue
                    for w in range(W):
                        ww = w + dx - 1
                        if not 0 <= ww < W:
                            continue
                        mat[hh * W + ww, c * HW + h * W + w] += wgt
    bias = np.repeat(cb, HW).reshape(1, C * HW)
    return jnp.asarray(mat), jnp.asarray(bias)


def _build_pool_masks(H, W, C):
    """{0,1} validity masks for the 8 non-center 3x3 maxpool taps, expanded to
    the channel-major flattened (C*H*W) layout (same mask per channel block).
    Order matches the (dy, dx) loop in the kernel."""
    hs = np.arange(H).reshape(H, 1)
    ws = np.arange(W).reshape(1, W)
    rows = []
    for dy in (-1, 0, 1):
        for dx in (-1, 0, 1):
            if dy == 0 and dx == 0:
                continue
            valid = ((hs + dy >= 0) & (hs + dy < H) &
                     (ws + dx >= 0) & (ws + dx < W)).astype(np.float32)
            rows.append(np.tile(valid.reshape(H * W), C))
    return jnp.asarray(np.stack(rows, axis=0))       # (8, C*H*W)


def prepare_params(p, H, W):
    C = p['conv_w'].shape[0]
    conv_mat, conv_b = _build_conv_matrix(p['conv_w'], p['conv_b'], H, W)
    return {
        'conv_mat': conv_mat,                         # (H*W, C*H*W)
        'conv_b': conv_b,                             # (1, C*H*W)
        'pool_mask': _build_pool_masks(H, W, C),      # (8, C*H*W)
        'fc1_wt': p['fc1_w'].T, 'fc1_b': p['fc1_b'].reshape(1, -1),
        'fc2_wt': p['fc2_w'].T, 'fc2_b': p['fc2_b'].reshape(1, -1),
    }


@jax.jit
def convdip_forward(x, pp):
    """x: (N, 1, H, W) float32 (NCHW, single input channel)."""
    N, _, H, W = x.shape
    C = pp['conv_b'].shape[1] // (H * W)
    x_flat = x.reshape(N, H * W)                      # no channel tiling needed
    return fused_forward(x_flat, pp, H, W, C)


# ---------------------------------------------------------------------------
# Pure-JAX reference (correctness check only, not the kernel path).
# ---------------------------------------------------------------------------
def ref_forward(x, p):
    hi = jax.lax.Precision.HIGHEST
    y = jax.lax.conv_general_dilated(
        x, p['conv_w'], window_strides=(1, 1), padding=((1, 1), (1, 1)),
        dimension_numbers=('NCHW', 'OIHW', 'NCHW'), precision=hi)
    y = jnp.maximum(y + p['conv_b'][None, :, None, None], 0.0)
    y = jax.lax.reduce_window(y, -jnp.inf, jax.lax.max,
                              (1, 1, 3, 3), (1, 1, 1, 1),
                              ((0, 0), (0, 0), (1, 1), (1, 1)))
    N = y.shape[0]
    flat = y.reshape(N, -1)
    # SE branch of the module does not influence final_out; not reproduced.
    h = jnp.maximum(jnp.dot(flat, p['fc1_w'].T, precision=hi) + p['fc1_b'], 0.)
    return jnp.dot(h, p['fc2_w'].T, precision=hi) + p['fc2_b']


def init_params(key, C=8, H=8, W=8, fc2=128, out_dim=256):
    F = C * H * W
    ks = jax.random.split(key, 10)
    s = 0.05
    nrm = lambda k, shp: s * jax.random.normal(k, shp, jnp.float32)
    return {
        'conv_w': nrm(ks[0], (C, 1, 3, 3)),
        'conv_b': nrm(ks[1], (C,)),
        'se_w1': nrm(ks[2], (4, C)),          # kept for parity with the module;
        'se_b1': nrm(ks[3], (4,)),            # unused (SE is dead code w.r.t.
        'se_w2': nrm(ks[4], (C, 4)),          # final_out)
        'se_b2': nrm(ks[5], (C,)),
        'fc1_w': nrm(ks[6], (fc2, F)),        # Linear(fc1_num, fc2_num)
        'fc1_b': nrm(ks[7], (fc2,)),
        'fc2_w': nrm(ks[8], (out_dim, fc2)),  # Linear(fc2_num, output_num)
        'fc2_b': nrm(ks[9], (out_dim,)),
    }


if __name__ == "__main__":
    # Small shapes consistent with the module: channel_num=1, conv1_num=8,
    # 8x8 spatial -> fc1_num = 8*8*8 = 512, fc2_num=128, output_num=256.
    N, H, W, C = 2, 8, 8, 8
    key = jax.random.PRNGKey(0)
    kx, kp = jax.random.split(key)
    x = jax.random.normal(kx, (N, 1, H, W), jnp.float32)
    params = init_params(kp, C=C, H=H, W=W, fc2=128, out_dim=256)
    pp = prepare_params(params, H, W)        # one-time weight layout prep

    out = jax.block_until_ready(convdip_forward(x, pp))

    ref = jax.block_until_ready(ref_forward(x, params))
    assert out.shape == ref.shape == (N, 256), out.shape
    assert jnp.allclose(out, ref, rtol=2e-2, atol=2e-3), (
        float(jnp.max(jnp.abs(out - ref))))
    print("KERNEL_OK")
</pallas_src>

<mosaic_0001>
module attributes {stable_mosaic.version = 11 : i64} {
  func.func @_fused_kernel(%arg0: i32, %arg1: memref<2x64xf32, #tpu.memory_space<vmem>>, %arg2: memref<64x512xf32, #tpu.memory_space<vmem>>, %arg3: memref<1x512xf32, #tpu.memory_space<vmem>>, %arg4: memref<8x512xf32, #tpu.memory_space<vmem>>, %arg5: memref<512x128xf32, #tpu.memory_space<vmem>>, %arg6: memref<1x128xf32, #tpu.memory_space<vmem>>, %arg7: memref<128x256xf32, #tpu.memory_space<vmem>>, %arg8: memref<1x256xf32, #tpu.memory_space<vmem>>, %arg9: memref<2x256xf32, #tpu.memory_space<vmem>>) attributes {dimension_semantics = [#tpu.dimension_semantics<parallel>], iteration_bounds = array<i64: 1>, scalar_prefetch = 0 : i64, scratch_operands = 0 : i64, tpu.core_type = #tpu.core_type<tc>, window_params = [{transform_indices = @transform_0, window_bounds = array<i64: 2, 64>}, {pipeline_mode = #tpu.pipeline_mode<synchronous>, transform_indices = @transform_1, window_bounds = array<i64: 64, 512>}, {pipeline_mode = #tpu.pipeline_mode<synchronous>, transform_indices = @transform_2, window_bounds = array<i64: 1, 512>}, {pipeline_mode = #tpu.pipeline_mode<synchronous>, transform_indices = @transform_3, window_bounds = array<i64: 8, 512>}, {pipeline_mode = #tpu.pipeline_mode<synchronous>, transform_indices = @transform_4, window_bounds = array<i64: 512, 128>}, {pipeline_mode = #tpu.pipeline_mode<synchronous>, transform_indices = @transform_5, window_bounds = array<i64: 1, 128>}, {pipeline_mode = #tpu.pipeline_mode<synchronous>, transform_indices = @transform_6, window_bounds = array<i64: 128, 256>}, {pipeline_mode = #tpu.pipeline_mode<synchronous>, transform_indices = @transform_7, window_bounds = array<i64: 1, 256>}, {transform_indices = @transform_8, window_bounds = array<i64: 2, 256>}]} {
    %c0 = arith.constant 0 : index
    %c0_0 = arith.constant 0 : index
    %0 = vector.load %arg1[%c0, %c0_0] : memref<2x64xf32, #tpu.memory_space<vmem>>, vector<2x64xf32>
    %c0_1 = arith.constant 0 : index
    %c0_2 = arith.constant 0 : index
    %1 = vector.load %arg2[%c0_1, %c0_2] : memref<64x512xf32, #tpu.memory_space<vmem>>, vector<64x512xf32>
    %cst = arith.constant dense<0.000000e+00> : vector<2x512xf32>
    %2 = tpu.matmul %0, %1, %cst {dimension_numbers = #tpu.dot_dimension_numbers<[1], [0], [0], [1], [0, 0, 1, 1], [], []>} : vector<2x64xf32>, vector<64x512xf32>, vector<2x512xf32> -> vector<2x512xf32>
    %c0_3 = arith.constant 0 : index
    %c0_4 = arith.constant 0 : index
    %3 = vector.load %arg3[%c0_3, %c0_4] : memref<1x512xf32, #tpu.memory_space<vmem>>, vector<1x512xf32>
    %4 = vector.broadcast %3 : vector<1x512xf32> to vector<2x512xf32>
    %5 = arith.addf %2, %4 : vector<2x512xf32>
    %cst_5 = arith.constant 0.000000e+00 : f32
    %6 = vector.broadcast %cst_5 : f32 to vector<2x512xf32>
    %7 = arith.maximumf %5, %6 : vector<2x512xf32>
    %c0_6 = arith.constant 0 : index
    %c0_7 = arith.constant 0 : index
    %8 = vector.load %arg4[%c0_6, %c0_7] : memref<8x512xf32, #tpu.memory_space<vmem>>, vector<8x512xf32>
    %c9_i32 = arith.constant 9 : i32
    %9 = tpu.dynamic_rotate %7 by %c9_i32 dim 1 : vector<2x512xf32>, i32 -> vector<2x512xf32>
    %10 = vector.extract_strided_slice %8 {offsets = [0, 0], sizes = [1, 512], strides = [1, 1]} : vector<8x512xf32> to vector<1x512xf32>
    %11 = vector.broadcast %10 : vector<1x512xf32> to vector<2x512xf32>
    %12 = arith.mulf %9, %11 : vector<2x512xf32>
    %13 = arith.maximumf %7, %12 : vector<2x512xf32>
    %c8_i32 = arith.constant 8 : i32
    %14 = tpu.dynamic_rotate %7 by %c8_i32 dim 1 : vector<2x512xf32>, i32 -> vector<2x512xf32>
    %15 = vector.extract_strided_slice %8 {offsets = [1, 0], sizes = [1, 512], strides = [1, 1]} : vector<8x512xf32> to vector<1x512xf32>
    %16 = vector.broadcast %15 : vector<1x512xf32> to vector<2x512xf32>
    %17 = arith.mulf %14, %16 : vector<2x512xf32>
    %18 = arith.maximumf %13, %17 : vector<2x512xf32>
    %c7_i32 = arith.constant 7 : i32
    %19 = tpu.dynamic_rotate %7 by %c7_i32 dim 1 : vector<2x512xf32>, i32 -> vector<2x512xf32>
    %20 = vector.extract_strided_slice %8 {offsets = [2, 0], sizes = [1, 512], strides = [1, 1]} : vector<8x512xf32> to vector<1x512xf32>
    %21 = vector.broadcast %20 : vector<1x512xf32> to vector<2x512xf32>
    %22 = arith.mulf %19, %21 : vector<2x512xf32>
    %23 = arith.maximumf %18, %22 : vector<2x512xf32>
    %c1_i32 = arith.constant 1 : i32
    %24 = tpu.dynamic_rotate %7 by %c1_i32 dim 1 : vector<2x512xf32>, i32 -> vector<2x512xf32>
    %25 = vector.extract_strided_slice %8 {offsets = [3, 0], sizes = [1, 512], strides = [1, 1]} : vector<8x512xf32> to vector<1x512xf32>
    %26 = vector.broadcast %25 : vector<1x512xf32> to vector<2x512xf32>
    %27 = arith.mulf %24, %26 : vector<2x512xf32>
    %28 = arith.maximumf %23, %27 : vector<2x512xf32>
    %c511_i32 = arith.constant 511 : i32
    %29 = tpu.dynamic_rotate %7 by %c511_i32 dim 1 : vector<2x512xf32>, i32 -> vector<2x512xf32>
    %30 = vector.extract_strided_slice %8 {offsets = [4, 0], sizes = [1, 512], strides = [1, 1]} : vector<8x512xf32> to vector<1x512xf32>
    %31 = vector.broadcast %30 : vector<1x512xf32> to vector<2x512xf32>
    %32 = arith.mulf %29, %31 : vector<2x512xf32>
    %33 = arith.maximumf %28, %32 : vector<2x512xf32>
    %c505_i32 = arith.constant 505 : i32
    %34 = tpu.dynamic_rotate %7 by %c505_i32 dim 1 : vector<2x512xf32>, i32 -> vector<2x512xf32>
    %35 = vector.extract_strided_slice %8 {offsets = [5, 0], sizes = [1, 512], strides = [1, 1]} : vector<8x512xf32> to vector<1x512xf32>
    %36 = vector.broadcast %35 : vector<1x512xf32> to vector<2x512xf32>
    %37 = arith.mulf %34, %36 : vector<2x512xf32>
    %38 = arith.maximumf %33, %37 : vector<2x512xf32>
    %c504_i32 = arith.constant 504 : i32
    %39 = tpu.dynamic_rotate %7 by %c504_i32 dim 1 : vector<2x512xf32>, i32 -> vector<2x512xf32>
    %40 = vector.extract_strided_slice %8 {offsets = [6, 0], sizes = [1, 512], strides = [1, 1]} : vector<8x512xf32> to vector<1x512xf32>
    %41 = vector.broadcast %40 : vector<1x512xf32> to vector<2x512xf32>
    %42 = arith.mulf %39, %41 : vector<2x512xf32>
    %43 = arith.maximumf %38, %42 : vector<2x512xf32>
    %c503_i32 = arith.constant 503 : i32
    %44 = tpu.dynamic_rotate %7 by %c503_i32 dim 1 : vector<2x512xf32>, i32 -> vector<2x512xf32>
    %45 = vector.extract_strided_slice %8 {offsets = [7, 0], sizes = [1, 512], strides = [1, 1]} : vector<8x512xf32> to vector<1x512xf32>
    %46 = vector.broadcast %45 : vector<1x512xf32> to vector<2x512xf32>
    %47 = arith.mulf %44, %46 : vector<2x512xf32>
    %48 = arith.maximumf %43, %47 : vector<2x512xf32>
    %c0_8 = arith.constant 0 : index
    %c0_9 = arith.constant 0 : index
    %49 = vector.load %arg5[%c0_8, %c0_9] : memref<512x128xf32, #tpu.memory_space<vmem>>, vector<512x128xf32>
    %cst_10 = arith.constant dense<0.000000e+00> : vector<2x128xf32>
    %50 = tpu.matmul %48, %49, %cst_10 {dimension_numbers = #tpu.dot_dimension_numbers<[1], [0], [0], [1], [0, 0, 1, 1], [], []>} : vector<2x512xf32>, vector<512x128xf32>, vector<2x128xf32> -> vector<2x128xf32>
    %c0_11 = arith.constant 0 : index
    %c0_12 = arith.constant 0 : index
    %51 = vector.load %arg6[%c0_11, %c0_12] : memref<1x128xf32, #tpu.memory_space<vmem>>, vector<1x128xf32>
    %52 = vector.broadcast %51 : vector<1x128xf32> to vector<2x128xf32>
    %53 = arith.addf %50, %52 : vector<2x128xf32>
    %cst_13 = arith.constant 0.000000e+00 : f32
    %54 = vector.broadcast %cst_13 : f32 to vector<2x128xf32>
    %55 = arith.maximumf %53, %54 : vector<2x128xf32>
    %c0_14 = arith.constant 0 : index
    %c0_15 = arith.constant 0 : index
    %56 = vector.load %arg7[%c0_14, %c0_15] : memref<128x256xf32, #tpu.memory_space<vmem>>, vector<128x256xf32>
    %cst_16 = arith.constant dense<0.000000e+00> : vector<2x256xf32>
    %57 = tpu.matmul %55, %56, %cst_16 {dimension_numbers = #tpu.dot_dimension_numbers<[1], [0], [0], [1], [0, 0, 1, 1], [], []>} : vector<2x128xf32>, vector<128x256xf32>, vector<2x256xf32> -> vector<2x256xf32>
    %c0_17 = arith.constant 0 : index
    %c0_18 = arith.constant 0 : index
    %58 = vector.load %arg8[%c0_17, %c0_18] : memref<1x256xf32, #tpu.memory_space<vmem>>, vector<1x256xf32>
    %59 = vector.broadcast %58 : vector<1x256xf32> to vector<2x256xf32>
    %60 = arith.addf %57, %59 : vector<2x256xf32>
    %c0_19 = arith.constant 0 : index
    %c0_20 = arith.constant 0 : index
    %61 = vector.load %arg9[%c0_19, %c0_20] : memref<2x256xf32, #tpu.memory_space<vmem>>, vector<2x256xf32>
    tpu.vector_store %arg9[%c0_19, %c0_20], %60 {strides = array<i32>} : memref<2x256xf32, #tpu.memory_space<vmem>>, vector<2x256xf32>,
    return
  }
  func.func @transform_0(%arg0: i32) -> (i32, i32) {
    %c0_i32 = arith.constant 0 : i32
    %c0_i32_0 = arith.constant 0 : i32
    return %arg0, %c0_i32 : i32, i32
  }
  func.func @transform_1(%arg0: i32) -> (i32, i32) {
    %c0_i32 = arith.constant 0 : i32
    %c0_i32_0 = arith.constant 0 : i32
    %c0_i32_1 = arith.constant 0 : i32
    return %c0_i32, %c0_i32_0 : i32, i32
  }
  func.func @transform_2(%arg0: i32) -> (i32, i32) {
    %c0_i32 = arith.constant 0 : i32
    %c0_i32_0 = arith.constant 0 : i32
    %c0_i32_1 = arith.constant 0 : i32
    return %c0_i32, %c0_i32_0 : i32, i32
  }
  func.func @transform_3(%arg0: i32) -> (i32, i32) {
    %c0_i32 = arith.constant 0 : i32
    %c0_i32_0 = arith.constant 0 : i32
    %c0_i32_1 = arith.constant 0 : i32
    return %c0_i32, %c0_i32_0 : i32, i32
  }
  func.func @transform_4(%arg0: i32) -> (i32, i32) {
    %c0_i32 = arith.constant 0 : i32
    %c0_i32_0 = arith.constant 0 : i32
    %c0_i32_1 = arith.constant 0 : i32
    return %c0_i32, %c0_i32_0 : i32, i32
  }
  func.func @transform_5(%arg0: i32) -> (i32, i32) {
    %c0_i32 = arith.constant 0 : i32
    %c0_i32_0 = arith.constant 0 : i32
    %c0_i32_1 = arith.constant 0 : i32
    return %c0_i32, %c0_i32_0 : i32, i32
  }
  func.func @transform_6(%arg0: i32) -> (i32, i32) {
    %c0_i32 = arith.constant 0 : i32
    %c0_i32_0 = arith.constant 0 : i32
    %c0_i32_1 = arith.constant 0 : i32
    return %c0_i32, %c0_i32_0 : i32, i32
  }
  func.func @transform_7(%arg0: i32) -> (i32, i32) {
    %c0_i32 = arith.constant 0 : i32
    %c0_i32_0 = arith.constant 0 : i32
    %c0_i32_1 = arith.constant 0 : i32
    return %c0_i32, %c0_i32_0 : i32, i32
  }
  func.func @transform_8(%arg0: i32) -> (i32, i32) {
    %c0_i32 = arith.constant 0 : i32
    %c0_i32_0 = arith.constant 0 : i32
    return %arg0, %c0_i32 : i32, i32
  }
}

</mosaic_0001>

<llo_original>
// kernel: convdip_forward.1
$region0: #{convdip_forward.1}
  #allocation0 [shape = 'u32[]', space=smem, size = 0x4, offset = 0x4, fixed_abs, tag = 'smem constant byte address 0x4 - core index']
  #allocation1 [shape = 'u32[144,128]{1,0:T(1,128)}', space=vmem, size = 0x12000, scoped, tag = 'internal scratch']
  %s0 = inlined_call_operand.vmem [shape: f32[2,64], index: 0, kind: input, shape index: {}]
  %s1 = inlined_call_operand.hbm [shape: f32[64,512], index: 1, kind: input, shape index: {}]
  %s2 = inlined_call_operand.vmem [shape: f32[1,512], index: 2, kind: input, shape index: {}]
  %s3 = inlined_call_operand.vmem [shape: f32[8,512], index: 3, kind: input, shape index: {}]
  %s4 = inlined_call_operand.hbm [shape: f32[512,128], index: 4, kind: input, shape index: {}]
  %s5 = inlined_call_operand.vmem [shape: f32[1,128], index: 5, kind: input, shape index: {}]
  %s6 = inlined_call_operand.hbm [shape: f32[128,256], index: 6, kind: input, shape index: {}]
  %s7 = inlined_call_operand.vmem [shape: f32[1,256], index: 7, kind: input, shape index: {}]
  %s8 = inlined_call_operand.hbm [shape: f32[2,256], index: 8, kind: output, shape index: {}]
  %s9 = sld [smem:[#allocation0]]
  $region54: #{convdip_forward.1} parent=0
    _
  %s11 = ssub.s32 1, %s9
  %s12 = scalar_select 0, %s11, %s9
  $region1: #{convdip_forward.1} parent=0
    #allocation2 [shape = 'u8[131072]{0}', space=vmem, size = 0x20000, scoped, tag = 'input window, operand 1, single buffered']
    #allocation3 [shape = 's32[1]{0}', space=sflag, size = 0x4, scoped, tag = 'scoped memory for convdip_forward.1']
    #allocation4 [shape = 's32[1]{0}', space=sflag, size = 0x4, scoped, tag = 'scoped memory for convdip_forward.1']
    #allocation5 [shape = 'u8[262144]{0}', space=vmem, size = 0x40000, scoped, tag = 'input window, operand 4, single buffered']
    #allocation6 [shape = 's32[1]{0}', space=sflag, size = 0x4, scoped, tag = 'scoped memory for convdip_forward.1']
    #allocation7 [shape = 'u8[131072]{0}', space=vmem, size = 0x20000, scoped, tag = 'input window, operand 6, single buffered']
    #allocation8 [shape = 'u8[2048]{0}', space=vmem, size = 0x800, scoped, tag = 'output window, operand 0, single buffered']
    %13 = vsyncpa [#allocation3], 0
    %14 = vsyncpa [#allocation6], 0
    %15 = vsyncpa [#allocation4], 0
    // Predicated region
    $region2: #{convdip_forward.1} parent=1 // pred_check
      _
    $region3: #{convdip_forward.1} parent=1 // pred_check_branch
      %17 = sbr.rel (0) target = $region5
    $region4: #{convdip_forward.1} parent=1 // pred_region
      _
    $region5: #{convdip_forward.1} parent=1 // pred_fallthru
      _
    // Predicated region
    $region6: #{convdip_forward.1} parent=1 // pred_check
      _
    $region7: #{convdip_forward.1} parent=1 // pred_check_branch
      %19 = sbr.rel (0) target = $region9
    $region8: #{convdip_forward.1} parent=1 // pred_region
      %s21 = ssub.s32 4096, 4096
      %22 = vsyncadd [#allocation3], %s21
      %s23 = sshll.u32 [#allocation2], 4
      %s24 = int_to_ptr.vmem [resolvable:$true] %s23
      %29 = dma.hbm_to_vmem [thread:$0]  %s1, 4096, %s24, [#allocation3], 512, 512, 32
    $region9: #{convdip_forward.1} parent=1 // pred_fallthru
      _
    // Predicated region
    $region10: #{convdip_forward.1} parent=1 // pred_check
      _
    $region11: #{convdip_forward.1} parent=1 // pred_check_branch
      %31 = sbr.rel (0) target = $region13
    $region12: #{convdip_forward.1} parent=1 // pred_region
      _
    $region13: #{convdip_forward.1} parent=1 // pred_fallthru
      _
    // Predicated region
    $region14: #{convdip_forward.1} parent=1 // pred_check
      _
    $region15: #{convdip_forward.1} parent=1 // pred_check_branch
      %33 = sbr.rel (0) target = $region17
    $region16: #{convdip_forward.1} parent=1 // pred_region
      _
    $region17: #{convdip_forward.1} parent=1 // pred_fallthru
      _
    // Predicated region
    $region18: #{convdip_forward.1} parent=1 // pred_check
      _
    $region19: #{convdip_forward.1} parent=1 // pred_check_branch
      %35 = sbr.rel (0) target = $region21
    $region20: #{convdip_forward.1} parent=1 // pred_region
      %s37 = ssub.s32 8192, 8192
      %38 = vsyncadd [#allocation6], %s37
      %s39 = sshll.u32 [#allocation5], 4
      %s40 = int_to_ptr.vmem [resolvable:$true] %s39
      %45 = dma.hbm_to_vmem [thread:$0]  %s4, 8192, %s40, [#allocation6], 128, 128, 8
    $region21: #{convdip_forward.1} parent=1 // pred_fallthru
      _
    // Predicated region
    $region22: #{convdip_forward.1} parent=1 // pred_check
      _
    $region23: #{convdip_forward.1} parent=1 // pred_check_branch
      %47 = sbr.rel (0) target = $region25
    $region24: #{convdip_forward.1} parent=1 // pred_region
      _
    $region25: #{convdip_forward.1} parent=1 // pred_fallthru
      _
    // Predicated region
    $region26: #{convdip_forward.1} parent=1 // pred_check
      _
    $region27: #{convdip_forward.1} parent=1 // pred_check_branch
      %49 = sbr.rel (0) target = $region29
    $region28: #{convdip_forward.1} parent=1 // pred_region
      %s51 = ssub.s32 4096, 4096
      %52 = vsyncadd [#allocation6], %s51
      %s53 = sshll.u32 [#allocation7], 4
      %s54 = int_to_ptr.vmem [resolvable:$true] %s53
      %59 = dma.hbm_to_vmem [thread:$0]  %s6, 4096, %s54, [#allocation6], 256, 256, 16
    $region29: #{convdip_forward.1} parent=1 // pred_fallthru
      _
    // Predicated region
    $region30: #{convdip_forward.1} parent=1 // pred_check
      _
    $region31: #{convdip_forward.1} parent=1 // pred_check_branch
      %61 = sbr.rel (0) target = $region33
    $region32: #{convdip_forward.1} parent=1 // pred_region
      _
    $region33: #{convdip_forward.1} parent=1 // pred_fallthru
      _
    // Predicated region
    $region34: #{convdip_forward.1} parent=1 // pred_check
      _
    $region35: #{convdip_forward.1} parent=1 // pred_check_branch
      %63 = sbr.rel (0) target = $region37
    $region36: #{convdip_forward.1} parent=1 // pred_region
      %64 = dma.done [#allocation3], 4096
    $region37: #{convdip_forward.1} parent=1 // pred_fallthru
      _
    // Predicated region
    $region38: #{convdip_forward.1} parent=1 // pred_check
      _
    $region39: #{convdip_forward.1} parent=1 // pred_check_branch
      %66 = sbr.rel (0) target = $region41
    $region40: #{convdip_forward.1} parent=1 // pred_region
      %67 = dma.done [#allocation6], 8192
    $region41: #{convdip_forward.1} parent=1 // pred_fallthru
      _
    // Predicated region
    $region42: #{convdip_forward.1} parent=1 // pred_check
      _
    $region43: #{convdip_forward.1} parent=1 // pred_check_branch
      %69 = sbr.rel (0) target = $region45
    $region44: #{convdip_forward.1} parent=1 // pred_region
      %70 = dma.done [#allocation6], 4096
    $region45: #{convdip_forward.1} parent=1 // pred_fallthru
      _
    %v71 = vld [vmem:[%s0] sm:$0x3]
    %v72 = vld [vmem:[#allocation2] sm:$0xff]
    %v73 = vld [vmem:[#allocation2 + $0x8] sm:$0xff]
    %v74 = vld [vmem:[#allocation2 + $0x10] sm:$0xff]
    %v75 = vld [vmem:[#allocation2 + $0x18] sm:$0xff]
    %v76 = vld [vmem:[#allocation2 + $0x20] sm:$0xff]
    %v77 = vld [vmem:[#allocation2 + $0x28] sm:$0xff]
    %v78 = vld [vmem:[#allocation2 + $0x30] sm:$0xff]
    %v79 = vld [vmem:[#allocation2 + $0x38] sm:$0xff]
    %v80 = vld [vmem:[#allocation2 + $0x40] sm:$0xff]
    %v81 = vld [vmem:[#allocation2 + $0x48] sm:$0xff]
    %v82 = vld [vmem:[#allocation2 + $0x50] sm:$0xff]
    %v83 = vld [vmem:[#allocation2 + $0x58] sm:$0xff]
    %v84 = vld [vmem:[#allocation2 + $0x60] sm:$0xff]
    %v85 = vld [vmem:[#allocation2 + $0x68] sm:$0xff]
    %v86 = vld [vmem:[#allocation2 + $0x70] sm:$0xff]
    %v87 = vld [vmem:[#allocation2 + $0x78] sm:$0xff]
    %v88 = vld [vmem:[#allocation2 + $0x80] sm:$0xff]
    %v89 = vld [vmem:[#allocation2 + $0x88] sm:$0xff]
    %v90 = vld [vmem:[#allocation2 + $0x90] sm:$0xff]
    %v91 = vld [vmem:[#allocation2 + $0x98] sm:$0xff]
    %v92 = vld [vmem:[#allocation2 + $0xa0] sm:$0xff]
    %v93 = vld [vmem:[#allocation2 + $0xa8] sm:$0xff]
    %v94 = vld [vmem:[#allocation2 + $0xb0] sm:$0xff]
    %v95 = vld [vmem:[#allocation2 + $0xb8] sm:$0xff]
    %v96 = vld [vmem:[#allocation2 + $0xc0] sm:$0xff]
    %v97 = vld [vmem:[#allocation2 + $0xc8] sm:$0xff]
    %v98 = vld [vmem:[#allocation2 + $0xd0] sm:$0xff]
    %v99 = vld [vmem:[#allocation2 + $0xd8] sm:$0xff]
    %v100 = vld [vmem:[#allocation2 + $0xe0] sm:$0xff]
    %v101 = vld [vmem:[#allocation2 + $0xe8] sm:$0xff]
    %v102 = vld [vmem:[#allocation2 + $0xf0] sm:$0xff]
    %v103 = vld [vmem:[#allocation2 + $0xf8] sm:$0xff]
    %v104 = vld [vmem:[%s2] sm:$0xf]
    %v106 = vlaneseq
    %v107 = vshrl.u32 %v106, 7
    %v108 = vsub.s32 0, %v107
    %v109 = vrot.slane %v104, %v108
    %v110 = vlaneseq
    %v111 = vshrl.u32 %v110, 7
    %v112 = vsub.s32 1, %v111
    %v113 = vrot.slane %v104, %v112
    %v114 = vlaneseq
    %v115 = vshrl.u32 %v114, 7
    %v116 = vsub.s32 2, %v115
    %v117 = vrot.slane %v104, %v116
    %v118 = vlaneseq
    %v119 = vshrl.u32 %v118, 7
    %v120 = vsub.s32 3, %v119
    %v121 = vrot.slane %v104, %v120
    %vm126 = vcmask 523264
    %v128 = vsel %vm126, %v71, 0
    %130 = vmatprep.subr.mxu0 %v73
    %131 = vmatpush1.msra.mxu0 %v72
    %132 = vmatprep.subr.mxu0 %v77
    %133 = vmatpush1.msra.mxu0 %v76
    %134 = vmatprep.subr.mxu0 %v81
    %135 = vmatpush1.msra.mxu0 %v80
    %136 = vmatprep.subr.mxu0 %v85
    %137 = vmatpush1.msra.mxu0 %v84
    %138 = vmatprep.subr.mxu0 %v89
    %139 = vmatpush1.msra.mxu0 %v88
    %140 = vmatprep.subr.mxu0 %v93
    %141 = vmatpush1.msra.mxu0 %v92
    %142 = vmatprep.subr.mxu0 %v97
    %143 = vmatpush1.msra.mxu0 %v96
    %144 = vmatprep.subr.mxu0 %v101
    %145 = vmatpush1.msra.mxu0 %v100
    %146 = vmatprep.subr.mxu0 0.0
    %147 = vmatpush1.msra.mxu0 0.0
    %148 = vmatprep.subr.mxu0 0.0
    %149 = vmatpush1.msra.mxu0 0.0
    %150 = vmatprep.subr.mxu0 0.0
    %151 = vmatpush1.msra.mxu0 0.0
    %152 = vmatprep.subr.mxu0 0.0
    %153 = vmatpush1.msra.mxu0 0.0
    %154 = vmatprep.subr.mxu0 0.0
    %155 = vmatpush1.msra.mxu0 0.0
    %156 = vmatprep.subr.mxu0 0.0
    %157 = vmatpush1.msra.mxu0 0.0
    %158 = vmatprep.subr.mxu0 0.0
    %159 = vmatpush1.msra.mxu0 0.0
    %160 = vmatprep.subr.mxu0 0.0
    %161 = vmatpush1.msra.mxu0 0.0
    %162 = vmatprep.subr.mxu0 0.0
    %163 = vmatpush1.msra.mxu0 0.0
    %164 = vmatprep.subr.mxu0 0.0
    %165 = vmatpush1.msra.mxu0 0.0
    %166 = vmatprep.subr.mxu0 0.0
    %167 = vmatpush1.msra.mxu0 0.0
    %168 = vmatprep.subr.mxu0 0.0
    %169 = vmatpush1.msra.mxu0 0.0
    %170 = vmatprep.subr.mxu0 0.0
    %171 = vmatpush1.msra.mxu0 0.0
    %172 = vmatprep.subr.mxu0 0.0
    %173 = vmatpush1.msra.mxu0 0.0
    %174 = vmatprep.subr.mxu0 0.0
    %175 = vmatpush1.msra.mxu0 0.0
    %176 = vmatprep.subr.mxu0 0.0
    %177 = vmatpush1.msra.mxu0 0.0
    %178 = vmatprep.subr.mxu0 0.0
    %179 = vmatpush1.msra.mxu0 0.0
    %180 = vmatprep.subr.mxu0 0.0
    %181 = vmatpush1.msra.mxu0 0.0
    %182 = vmatprep.subr.mxu0 0.0
    %183 = vmatpush1.msra.mxu0 0.0
    %184 = vmatprep.subr.mxu0 0.0
    %185 = vmatpush1.msra.mxu0 0.0
    %186 = vmatprep.subr.mxu0 0.0
    %187 = vmatpush1.msra.mxu0 0.0
    %188 = vmatprep.subr.mxu0 0.0
    %189 = vmatpush1.msra.mxu0 0.0
    %190 = vmatprep.subr.mxu0 0.0
    %191 = vmatpush1.msra.mxu0 0.0
    %192 = vmatprep.subr.mxu0 0.0
    %193 = vmatpush1.msra.mxu0 0.0
    %194 = vmatprep.mubr.f32.mxu0 0.0
    %195 = vmatmul.mubr.f32.gmra.mrb[0].mxu0 %v128
    %v196 = vpop.f32.mrb[0].mxu0
    %v197 = vadd.f32 %v109, %v196
    %v198 = vpop.f32.mrb[0].mxu0
    %v199 = vadd.f32 %v113, %v198
    %200 = vdwg.mxu0
    %201 = vmatprep.subr.mxu0 %v75
    %202 = vmatpush1.msra.mxu0 %v74
    %203 = vmatprep.subr.mxu0 %v79
    %204 = vmatpush1.msra.mxu0 %v78
    %205 = vmatprep.subr.mxu0 %v83
    %206 = vmatpush1.msra.mxu0 %v82
    %207 = vmatprep.subr.mxu0 %v87
    %208 = vmatpush1.msra.mxu0 %v86
    %209 = vmatprep.subr.mxu0 %v91
    %210 = vmatpush1.msra.mxu0 %v90
    %211 = vmatprep.subr.mxu0 %v95
    %212 = vmatpush1.msra.mxu0 %v94
    %213 = vmatprep.subr.mxu0 %v99
    %214 = vmatpush1.msra.mxu0 %v98
    %215 = vmatprep.subr.mxu0 %v103
    %216 = vmatpush1.msra.mxu0 %v102
    %217 = vmatprep.subr.mxu0 0.0
    %218 = vmatpush1.msra.mxu0 0.0
    %219 = vmatprep.subr.mxu0 0.0
    %220 = vmatpush1.msra.mxu0 0.0
    %221 = vmatprep.subr.mxu0 0.0
    %222 = vmatpush1.msra.mxu0 0.0
    %223 = vmatprep.subr.mxu0 0.0
    %224 = vmatpush1.msra.mxu0 0.0
    %225 = vmatprep.subr.mxu0 0.0
    %226 = vmatpush1.msra.mxu0 0.0
    %227 = vmatprep.subr.mxu0 0.0
    %228 = vmatpush1.msra.mxu0 0.0
    %229 = vmatprep.subr.mxu0 0.0
    %230 = vmatpush1.msra.mxu0 0.0
    %231 = vmatprep.subr.mxu0 0.0
    %232 = vmatpush1.msra.mxu0 0.0
    %233 = vmatprep.subr.mxu0 0.0
    %234 = vmatpush1.msra.mxu0 0.0
    %235 = vmatprep.subr.mxu0 0.0
    %236 = vmatpush1.msra.mxu0 0.0
    %237 = vmatprep.subr.mxu0 0.0
    %238 = vmatpush1.msra.mxu0 0.0
    %239 = vmatprep.subr.mxu0 0.0
    %240 = vmatpush1.msra.mxu0 0.0
    %241 = vmatprep.subr.mxu0 0.0
    %242 = vmatpush1.msra.mxu0 0.0
    %243 = vmatprep.subr.mxu0 0.0
    %244 = vmatpush1.msra.mxu0 0.0
    %245 = vmatprep.subr.mxu0 0.0
    %246 = vmatpush1.msra.mxu0 0.0
    %247 = vmatprep.subr.mxu0 0.0
    %248 = vmatpush1.msra.mxu0 0.0
    %249 = vmatprep.subr.mxu0 0.0
    %250 = vmatpush1.msra.mxu0 0.0
    %251 = vmatprep.subr.mxu0 0.0
    %252 = vmatpush1.msra.mxu0 0.0
    %253 = vmatprep.subr.mxu0 0.0
    %254 = vmatpush1.msra.mxu0 0.0
    %255 = vmatprep.subr.mxu0 0.0
    %256 = vmatpush1.msra.mxu0 0.0
    %257 = vmatprep.subr.mxu0 0.0
    %258 = vmatpush1.msra.mxu0 0.0
    %259 = vmatprep.subr.mxu0 0.0
    %260 = vmatpush1.msra.mxu0 0.0
    %261 = vmatprep.subr.mxu0 0.0
    %262 = vmatpush1.msra.mxu0 0.0
    %263 = vmatprep.subr.mxu0 0.0
    %264 = vmatpush1.msra.mxu0 0.0
    %265 = vmatprep.mubr.f32.mxu0 0.0
    %266 = vmatmul.mubr.f32.gmra.mrb[0].mxu0 %v128
    %v267 = vpop.f32.mrb[0].mxu0
    %v268 = vadd.f32 %v117, %v267
    %v269 = vpop.f32.mrb[0].mxu0
    %v270 = vadd.f32 %v121, %v269
    %271 = vdwg.mxu0
    %v272 = vmax.f32 %v197, 0.0
    %v273 = vmax.f32 %v199, 0.0
    %v274 = vmax.f32 %v268, 0.0
    %v275 = vmax.f32 %v270, 0.0
    %v276 = vld [vmem:[%s3] sm:$0xff]
    %v277 = vld [vmem:[%s3 + $0x8] sm:$0xff]
    %v278 = vld [vmem:[%s3 + $0x10] sm:$0xff]
    %v279 = vld [vmem:[%s3 + $0x18] sm:$0xff]
    %280 = vrot.lane.b32.xlu0 %v272, 9
    %v281 = vpop.permute.xlu0 %280
    %282 = vrot.lane.b32.xlu0 %v273, 9
    %v283 = vpop.permute.xlu0 %282
    %284 = vrot.lane.b32.xlu0 %v274, 9
    %v285 = vpop.permute.xlu0 %284
    %286 = vrot.lane.b32.xlu0 %v275, 9
    %v287 = vpop.permute.xlu0 %286
    %v288 = vlaneseq
    %v289 = vand.u32 %v288, 127
    %vm290 = vcmp.lt.s32.totalorder %v289, 9
    %v291 = vsel %vm290, %v285, %v287
    %v292 = vsel %vm290, %v283, %v285
    %v293 = vsel %vm290, %v281, %v283
    %v294 = vsel %vm290, %v287, %v281
    %v295 = vlaneseq
    %v296 = vshrl.u32 %v295, 7
    %v297 = vsub.s32 0, %v296
    %v298 = vrot.slane %v276, %v297
    %v299 = vlaneseq
    %v300 = vshrl.u32 %v299, 7
    %v301 = vsub.s32 0, %v300
    %v302 = vrot.slane %v277, %v301
    %v303 = vlaneseq
    %v304 = vshrl.u32 %v303, 7
    %v305 = vsub.s32 0, %v304
    %v306 = vrot.slane %v278, %v305
    %v307 = vlaneseq
    %v308 = vshrl.u32 %v307, 7
    %v309 = vsub.s32 0, %v308
    %v310 = vrot.slane %v279, %v309
    %v311 = vmul.f32 %v294, %v298
    %v312 = vmul.f32 %v293, %v302
    %v313 = vmul.f32 %v292, %v306
    %v314 = vmul.f32 %v291, %v310
    %v315 = vmax.f32 %v272, %v311
    %v316 = vmax.f32 %v273, %v312
    %v317 = vmax.f32 %v274, %v313
    %v318 = vmax.f32 %v275, %v314
    %319 = vrot.lane.b32.xlu0 %v272, 8
    %v320 = vpop.permute.xlu0 %319
    %321 = vrot.lane.b32.xlu0 %v273, 8
    %v322 = vpop.permute.xlu0 %321
    %323 = vrot.lane.b32.xlu0 %v274, 8
    %v324 = vpop.permute.xlu0 %323
    %325 = vrot.lane.b32.xlu0 %v275, 8
    %v326 = vpop.permute.xlu0 %325
    %vm327 = vcmp.lt.s32.totalorder %v289, 8
    %v328 = vsel %vm327, %v324, %v326
    %v329 = vsel %vm327, %v322, %v324
    %v330 = vsel %vm327, %v320, %v322
    %v331 = vsel %vm327, %v326, %v320
    %v332 = vlaneseq
    %v333 = vshrl.u32 %v332, 7
    %v334 = vsub.s32 1, %v333
    %v335 = vrot.slane %v276, %v334
    %v336 = vlaneseq
    %v337 = vshrl.u32 %v336, 7
    %v338 = vsub.s32 1, %v337
    %v339 = vrot.slane %v277, %v338
    %v340 = vlaneseq
    %v341 = vshrl.u32 %v340, 7
    %v342 = vsub.s32 1, %v341
    %v343 = vrot.slane %v278, %v342
    %v344 = vlaneseq
    %v345 = vshrl.u32 %v344, 7
    %v346 = vsub.s32 1, %v345
    %v347 = vrot.slane %v279, %v346
    %v348 = vmul.f32 %v331, %v335
    %v349 = vmul.f32 %v330, %v339
    %v350 = vmul.f32 %v329, %v343
    %v351 = vmul.f32 %v328, %v347
    %v352 = vmax.f32 %v315, %v348
    %v353 = vmax.f32 %v316, %v349
    %v354 = vmax.f32 %v317, %v350
    %v355 = vmax.f32 %v318, %v351
    %356 = vrot.lane.b32.xlu0 %v272, 7
    %v357 = vpop.permute.xlu0 %356
    %358 = vrot.lane.b32.xlu0 %v273, 7
    %v359 = vpop.permute.xlu0 %358
    %360 = vrot.lane.b32.xlu0 %v274, 7
    %v361 = vpop.permute.xlu0 %360
    %362 = vrot.lane.b32.xlu0 %v275, 7
    %v363 = vpop.permute.xlu0 %362
    %vm364 = vcmp.lt.s32.totalorder %v289, 7
    %v365 = vsel %vm364, %v361, %v363
    %v366 = vsel %vm364, %v359, %v361
    %v367 = vsel %vm364, %v357, %v359
    %v368 = vsel %vm364, %v363, %v357
    %v369 = vlaneseq
    %v370 = vshrl.u32 %v369, 7
    %v371 = vsub.s32 2, %v370
    %v372 = vrot.slane %v276, %v371
    %v373 = vlaneseq
    %v374 = vshrl.u32 %v373, 7
    %v375 = vsub.s32 2, %v374
    %v376 = vrot.slane %v277, %v375
    %v377 = vlaneseq
    %v378 = vshrl.u32 %v377, 7
    %v379 = vsub.s32 2, %v378
    %v380 = vrot.slane %v278, %v379
    %v381 = vlaneseq
    %v382 = vshrl.u32 %v381, 7
    %v383 = vsub.s32 2, %v382
    %v384 = vrot.slane %v279, %v383
    %v385 = vmul.f32 %v368, %v372
    %v386 = vmul.f32 %v367, %v376
    %v387 = vmul.f32 %v366, %v380
    %v388 = vmul.f32 %v365, %v384
    %v389 = vmax.f32 %v352, %v385
    %v390 = vmax.f32 %v353, %v386
    %v391 = vmax.f32 %v354, %v387
    %v392 = vmax.f32 %v355, %v388
    %393 = vrot.lane.b32.xlu0 %v272, 1
    %v394 = vpop.permute.xlu0 %393
    %395 = vrot.lane.b32.xlu0 %v273, 1
    %v396 = vpop.permute.xlu0 %395
    %397 = vrot.lane.b32.xlu0 %v274, 1
    %v398 = vpop.permute.xlu0 %397
    %399 = vrot.lane.b32.xlu0 %v275, 1
    %v400 = vpop.permute.xlu0 %399
    %vm401 = vcmp.lt.s32.totalorder %v289, 1
    %v402 = vsel %vm401, %v398, %v400
    %v403 = vsel %vm401, %v396, %v398
    %v404 = vsel %vm401, %v394, %v396
    %v405 = vsel %vm401, %v400, %v394
    %v406 = vlaneseq
    %v407 = vshrl.u32 %v406, 7
    %v408 = vsub.s32 3, %v407
    %v409 = vrot.slane %v276, %v408
    %v410 = vlaneseq
    %v411 = vshrl.u32 %v410, 7
    %v412 = vsub.s32 3, %v411
    %v413 = vrot.slane %v277, %v412
    %v414 = vlaneseq
    %v415 = vshrl.u32 %v414, 7
    %v416 = vsub.s32 3, %v415
    %v417 = vrot.slane %v278, %v416
    %v418 = vlaneseq
    %v419 = vshrl.u32 %v418, 7
    %v420 = vsub.s32 3, %v419
    %v421 = vrot.slane %v279, %v420
    %v422 = vmul.f32 %v405, %v409
    %v423 = vmul.f32 %v404, %v413
    %v424 = vmul.f32 %v403, %v417
    %v425 = vmul.f32 %v402, %v421
    %v426 = vmax.f32 %v389, %v422
    %v427 = vmax.f32 %v390, %v423
    %v428 = vmax.f32 %v391, %v424
    %v429 = vmax.f32 %v392, %v425
    %430 = vrot.lane.b32.xlu0 %v272, 127
    %v431 = vpop.permute.xlu0 %430
    %432 = vrot.lane.b32.xlu0 %v273, 127
    %v433 = vpop.permute.xlu0 %432
    %434 = vrot.lane.b32.xlu0 %v274, 127
    %v435 = vpop.permute.xlu0 %434
    %436 = vrot.lane.b32.xlu0 %v275, 127
    %v437 = vpop.permute.xlu0 %436
    %vm438 = vcmp.lt.s32.totalorder %v289, 127
    %v439 = vsel %vm438, %v435, %v437
    %v440 = vsel %vm438, %v433, %v435
    %v441 = vsel %vm438, %v431, %v433
    %v442 = vsel %vm438, %v437, %v431
    %v443 = vlaneseq
    %v444 = vshrl.u32 %v443, 7
    %v445 = vsub.s32 4, %v444
    %v446 = vrot.slane %v276, %v445
    %v447 = vlaneseq
    %v448 = vshrl.u32 %v447, 7
    %v449 = vsub.s32 4, %v448
    %v450 = vrot.slane %v277, %v449
    %v451 = vlaneseq
    %v452 = vshrl.u32 %v451, 7
    %v453 = vsub.s32 4, %v452
    %v454 = vrot.slane %v278, %v453
    %v455 = vlaneseq
    %v456 = vshrl.u32 %v455, 7
    %v457 = vsub.s32 4, %v456
    %v458 = vrot.slane %v279, %v457
    %v459 = vmul.f32 %v441, %v446
    %v460 = vmul.f32 %v440, %v450
    %v461 = vmul.f32 %v439, %v454
    %v462 = vmul.f32 %v442, %v458
    %v463 = vmax.f32 %v426, %v459
    %v464 = vmax.f32 %v427, %v460
    %v465 = vmax.f32 %v428, %v461
    %v466 = vmax.f32 %v429, %v462
    %467 = vrot.lane.b32.xlu0 %v272, 121
    %v468 = vpop.permute.xlu0 %467
    %469 = vrot.lane.b32.xlu0 %v273, 121
    %v470 = vpop.permute.xlu0 %469
    %471 = vrot.lane.b32.xlu0 %v274, 121
    %v472 = vpop.permute.xlu0 %471
    %473 = vrot.lane.b32.xlu0 %v275, 121
    %v474 = vpop.permute.xlu0 %473
    %vm475 = vcmp.lt.s32.totalorder %v289, 121
    %v476 = vsel %vm475, %v472, %v474
    %v477 = vsel %vm475, %v470, %v472
    %v478 = vsel %vm475, %v468, %v470
    %v479 = vsel %vm475, %v474, %v468
    %v480 = vlaneseq
    %v481 = vshrl.u32 %v480, 7
    %v482 = vsub.s32 5, %v481
    %v483 = vrot.slane %v276, %v482
    %v484 = vlaneseq
    %v485 = vshrl.u32 %v484, 7
    %v486 = vsub.s32 5, %v485
    %v487 = vrot.slane %v277, %v486
    %v488 = vlaneseq
    %v489 = vshrl.u32 %v488, 7
    %v490 = vsub.s32 5, %v489
    %v491 = vrot.slane %v278, %v490
    %v492 = vlaneseq
    %v493 = vshrl.u32 %v492, 7
    %v494 = vsub.s32 5, %v493
    %v495 = vrot.slane %v279, %v494
    %v496 = vmul.f32 %v478, %v483
    %v497 = vmul.f32 %v477, %v487
    %v498 = vmul.f32 %v476, %v491
    %v499 = vmul.f32 %v479, %v495
    %v500 = vmax.f32 %v463, %v496
    %v501 = vmax.f32 %v464, %v497
    %v502 = vmax.f32 %v465, %v498
    %v503 = vmax.f32 %v466, %v499
    %504 = vrot.lane.b32.xlu0 %v272, 120
    %v505 = vpop.permute.xlu0 %504
    %506 = vrot.lane.b32.xlu0 %v273, 120
    %v507 = vpop.permute.xlu0 %506
    %508 = vrot.lane.b32.xlu0 %v274, 120
    %v509 = vpop.permute.xlu0 %508
    %510 = vrot.lane.b32.xlu0 %v275, 120
    %v511 = vpop.permute.xlu0 %510
    %vm512 = vcmp.lt.s32.totalorder %v289, 120
    %v513 = vsel %vm512, %v509, %v511
    %v514 = vsel %vm512, %v507, %v509
    %v515 = vsel %vm512, %v505, %v507
    %v516 = vsel %vm512, %v511, %v505
    %v517 = vlaneseq
    %v518 = vshrl.u32 %v517, 7
    %v519 = vsub.s32 6, %v518
    %v520 = vrot.slane %v276, %v519
    %v521 = vlaneseq
    %v522 = vshrl.u32 %v521, 7
    %v523 = vsub.s32 6, %v522
    %v524 = vrot.slane %v277, %v523
    %v525 = vlaneseq
    %v526 = vshrl.u32 %v525, 7
    %v527 = vsub.s32 6, %v526
    %v528 = vrot.slane %v278, %v527
    %v529 = vlaneseq
    %v530 = vshrl.u32 %v529, 7
    %v531 = vsub.s32 6, %v530
    %v532 = vrot.slane %v279, %v531
    %v533 = vmul.f32 %v515, %v520
    %v534 = vmul.f32 %v514, %v524
    %v535 = vmul.f32 %v513, %v528
    %v536 = vmul.f32 %v516, %v532
    %v537 = vmax.f32 %v500, %v533
    %v538 = vmax.f32 %v501, %v534
    %v539 = vmax.f32 %v502, %v535
    %v540 = vmax.f32 %v503, %v536
    %541 = vrot.lane.b32.xlu0 %v272, 119
    %v542 = vpop.permute.xlu0 %541
    %543 = vrot.lane.b32.xlu0 %v273, 119
    %v544 = vpop.permute.xlu0 %543
    %545 = vrot.lane.b32.xlu0 %v274, 119
    %v546 = vpop.permute.xlu0 %545
    %547 = vrot.lane.b32.xlu0 %v275, 119
    %v548 = vpop.permute.xlu0 %547
    %vm549 = vcmp.lt.s32.totalorder %v289, 119
    %v550 = vsel %vm549, %v546, %v548
    %v551 = vsel %vm549, %v544, %v546
    %v552 = vsel %vm549, %v542, %v544
    %v553 = vsel %vm549, %v548, %v542
    %v554 = vlaneseq
    %v555 = vshrl.u32 %v554, 7
    %v556 = vsub.s32 7, %v555
    %v557 = vrot.slane %v276, %v556
    %v558 = vlaneseq
    %v559 = vshrl.u32 %v558, 7
    %v560 = vsub.s32 7, %v559
    %v561 = vrot.slane %v277, %v560
    %v562 = vlaneseq
    %v563 = vshrl.u32 %v562, 7
    %v564 = vsub.s32 7, %v563
    %v565 = vrot.slane %v278, %v564
    %v566 = vlaneseq
    %v567 = vshrl.u32 %v566, 7
    %v568 = vsub.s32 7, %v567
    %v569 = vrot.slane %v279, %v568
    %v570 = vmul.f32 %v552, %v557
    %v571 = vmul.f32 %v551, %v561
    %v572 = vmul.f32 %v550, %v565
    %v573 = vmul.f32 %v553, %v569
    %v574 = vmax.f32 %v537, %v570
    %v575 = vmax.f32 %v538, %v571
    %v576 = vmax.f32 %v539, %v572
    %v577 = vmax.f32 %v540, %v573
    %v578 = vld [vmem:[#allocation5] sm:$0xff]
    %v579 = vld [vmem:[#allocation5 + $0x8] sm:$0xff]
    %v580 = vld [vmem:[#allocation5 + $0x10] sm:$0xff]
    %v581 = vld [vmem:[#allocation5 + $0x18] sm:$0xff]
    %v582 = vld [vmem:[#allocation5 + $0x20] sm:$0xff]
    %v583 = vld [vmem:[#allocation5 + $0x28] sm:$0xff]
    %v584 = vld [vmem:[#allocation5 + $0x30] sm:$0xff]
    %v585 = vld [vmem:[#allocation5 + $0x38] sm:$0xff]
    %v586 = vld [vmem:[#allocation5 + $0x40] sm:$0xff]
    %v587 = vld [vmem:[#allocation5 + $0x48] sm:$0xff]
    %v588 = vld [vmem:[#allocation5 + $0x50] sm:$0xff]
    %v589 = vld [vmem:[#allocation5 + $0x58] sm:$0xff]
    %v590 = vld [vmem:[#allocation5 + $0x60] sm:$0xff]
    %v591 = vld [vmem:[#allocation5 + $0x68] sm:$0xff]
    %v592 = vld [vmem:[#allocation5 + $0x70] sm:$0xff]
    %v593 = vld [vmem:[#allocation5 + $0x78] sm:$0xff]
    %v594 = vld [vmem:[#allocation5 + $0x80] sm:$0xff]
    %v595 = vld [vmem:[#allocation5 + $0x88] sm:$0xff]
    %v596 = vld [vmem:[#allocation5 + $0x90] sm:$0xff]
    %v597 = vld [vmem:[#allocation5 + $0x98] sm:$0xff]
    %v598 = vld [vmem:[#allocation5 + $0xa0] sm:$0xff]
    %v599 = vld [vmem:[#allocation5 + $0xa8] sm:$0xff]
    %v600 = vld [vmem:[#allocation5 + $0xb0] sm:$0xff]
    %v601 = vld [vmem:[#allocation5 + $0xb8] sm:$0xff]
    %v602 = vld [vmem:[#allocation5 + $0xc0] sm:$0xff]
    %v603 = vld [vmem:[#allocation5 + $0xc8] sm:$0xff]
    %v604 = vld [vmem:[#allocation5 + $0xd0] sm:$0xff]
    %v605 = vld [vmem:[#allocation5 + $0xd8] sm:$0xff]
    %v606 = vld [vmem:[#allocation5 + $0xe0] sm:$0xff]
    %v607 = vld [vmem:[#allocation5 + $0xe8] sm:$0xff]
    %v608 = vld [vmem:[#allocation5 + $0xf0] sm:$0xff]
    %v609 = vld [vmem:[#allocation5 + $0xf8] sm:$0xff]
    %v610 = vld [vmem:[#allocation5 + $0x100] sm:$0xff]
    %v611 = vld [vmem:[#allocation5 + $0x108] sm:$0xff]
    %v612 = vld [vmem:[#allocation5 + $0x110] sm:$0xff]
    %v613 = vld [vmem:[#allocation5 + $0x118] sm:$0xff]
    %v614 = vld [vmem:[#allocation5 + $0x120] sm:$0xff]
    %v615 = vld [vmem:[#allocation5 + $0x128] sm:$0xff]
    %v616 = vld [vmem:[#allocation5 + $0x130] sm:$0xff]
    %v617 = vld [vmem:[#allocation5 + $0x138] sm:$0xff]
    %v618 = vld [vmem:[#allocation5 + $0x140] sm:$0xff]
    %v619 = vld [vmem:[#allocation5 + $0x148] sm:$0xff]
    %v620 = vld [vmem:[#allocation5 + $0x150] sm:$0xff]
    %v621 = vld [vmem:[#allocation5 + $0x158] sm:$0xff]
    %v622 = vld [vmem:[#allocation5 + $0x160] sm:$0xff]
    %v623 = vld [vmem:[#allocation5 + $0x168] sm:$0xff]
    %v624 = vld [vmem:[#allocation5 + $0x170] sm:$0xff]
    %v625 = vld [vmem:[#allocation5 + $0x178] sm:$0xff]
    %v626 = vld [vmem:[#allocation5 + $0x180] sm:$0xff]
    %v627 = vld [vmem:[#allocation5 + $0x188] sm:$0xff]
    %v628 = vld [vmem:[#allocation5 + $0x190] sm:$0xff]
    %v629 = vld [vmem:[#allocation5 + $0x198] sm:$0xff]
    %v630 = vld [vmem:[#allocation5 + $0x1a0] sm:$0xff]
    %v631 = vld [vmem:[#allocation5 + $0x1a8] sm:$0xff]
    %v632 = vld [vmem:[#allocation5 + $0x1b0] sm:$0xff]
    %v633 = vld [vmem:[#allocation5 + $0x1b8] sm:$0xff]
    %v634 = vld [vmem:[#allocation5 + $0x1c0] sm:$0xff]
    %v635 = vld [vmem:[#allocation5 + $0x1c8] sm:$0xff]
    %v636 = vld [vmem:[#allocation5 + $0x1d0] sm:$0xff]
    %v637 = vld [vmem:[#allocation5 + $0x1d8] sm:$0xff]
    %v638 = vld [vmem:[#allocation5 + $0x1e0] sm:$0xff]
    %v639 = vld [vmem:[#allocation5 + $0x1e8] sm:$0xff]
    %v640 = vld [vmem:[#allocation5 + $0x1f0] sm:$0xff]
    %v641 = vld [vmem:[#allocation5 + $0x1f8] sm:$0xff]
    %v642 = vld [vmem:[%s5] sm:$0x1]
    %v644 = vlaneseq
    %v645 = vshrl.u32 %v644, 7
    %v646 = vsub.s32 0, %v645
    %v647 = vrot.slane %v642, %v646
    %649 = vmatprep.subr.mxu0 0.0
    %650 = vmatpush1.msra.mxu0 %v578
    %651 = vmatprep.subr.mxu0 0.0
    %652 = vmatpush1.msra.mxu0 %v579
    %653 = vmatprep.subr.mxu0 0.0
    %654 = vmatpush1.msra.mxu0 %v580
    %655 = vmatprep.subr.mxu0 0.0
    %656 = vmatpush1.msra.mxu0 %v581
    %657 = vmatprep.subr.mxu0 0.0
    %658 = vmatpush1.msra.mxu0 %v582
    %659 = vmatprep.subr.mxu0 0.0
    %660 = vmatpush1.msra.mxu0 %v583
    %661 = vmatprep.subr.mxu0 0.0
    %662 = vmatpush1.msra.mxu0 %v584
    %663 = vmatprep.subr.mxu0 0.0
    %664 = vmatpush1.msra.mxu0 %v585
    %665 = vmatprep.subr.mxu0 0.0
    %666 = vmatpush1.msra.mxu0 %v586
    %667 = vmatprep.subr.mxu0 0.0
    %668 = vmatpush1.msra.mxu0 %v587
    %669 = vmatprep.subr.mxu0 0.0
    %670 = vmatpush1.msra.mxu0 %v588
    %671 = vmatprep.subr.mxu0 0.0
    %672 = vmatpush1.msra.mxu0 %v589
    %673 = vmatprep.subr.mxu0 0.0
    %674 = vmatpush1.msra.mxu0 %v590
    %675 = vmatprep.subr.mxu0 0.0
    %676 = vmatpush1.msra.mxu0 %v591
    %677 = vmatprep.subr.mxu0 0.0
    %678 = vmatpush1.msra.mxu0 %v592
    %679 = vmatprep.subr.mxu0 0.0
    %680 = vmatpush1.msra.mxu0 %v593
    %681 = vmatprep.subr.mxu0 0.0
    %682 = vmatpush1.msra.mxu0 %v594
    %683 = vmatprep.subr.mxu0 0.0
    %684 = vmatpush1.msra.mxu0 %v595
    %685 = vmatprep.subr.mxu0 0.0
    %686 = vmatpush1.msra.mxu0 %v596
    %687 = vmatprep.subr.mxu0 0.0
    %688 = vmatpush1.msra.mxu0 %v597
    %689 = vmatprep.subr.mxu0 0.0
    %690 = vmatpush1.msra.mxu0 %v598
    %691 = vmatprep.subr.mxu0 0.0
    %692 = vmatpush1.msra.mxu0 %v599
    %693 = vmatprep.subr.mxu0 0.0
    %694 = vmatpush1.msra.mxu0 %v600
    %695 = vmatprep.subr.mxu0 0.0
    %696 = vmatpush1.msra.mxu0 %v601
    %697 = vmatprep.subr.mxu0 0.0
    %698 = vmatpush1.msra.mxu0 %v602
    %699 = vmatprep.subr.mxu0 0.0
    %700 = vmatpush1.msra.mxu0 %v603
    %701 = vmatprep.subr.mxu0 0.0
    %702 = vmatpush1.msra.mxu0 %v604
    %703 = vmatprep.subr.mxu0 0.0
    %704 = vmatpush1.msra.mxu0 %v605
    %705 = vmatprep.subr.mxu0 0.0
    %706 = vmatpush1.msra.mxu0 %v606
    %707 = vmatprep.subr.mxu0 0.0
    %708 = vmatpush1.msra.mxu0 %v607
    %709 = vmatprep.subr.mxu0 0.0
    %710 = vmatpush1.msra.mxu0 %v608
    %711 = vmatprep.subr.mxu0 0.0
    %712 = vmatpush1.msra.mxu0 %v609
    %713 = vmatprep.mubr.f32.mxu0 %v575
    %714 = vmatmul.mubr.f32.gmra.mrb[0].mxu0 %v574
    %v715 = vpop.f32.mrb[0].mxu0
    %v716 = vadd.f32 %v647, %v715
    %v717 = vpop.f32.mrb[0].mxu0
    %718 = vdwg.mxu0
    %719 = vmatprep.subr.mxu0 0.0
    %720 = vmatpush1.msra.mxu0 %v610
    %721 = vmatprep.subr.mxu0 0.0
    %722 = vmatpush1.msra.mxu0 %v611
    %723 = vmatprep.subr.mxu0 0.0
    %724 = vmatpush1.msra.mxu0 %v612
    %725 = vmatprep.subr.mxu0 0.0
    %726 = vmatpush1.msra.mxu0 %v613
    %727 = vmatprep.subr.mxu0 0.0
    %728 = vmatpush1.msra.mxu0 %v614
    %729 = vmatprep.subr.mxu0 0.0
    %730 = vmatpush1.msra.mxu0 %v615
    %731 = vmatprep.subr.mxu0 0.0
    %732 = vmatpush1.msra.mxu0 %v616
    %733 = vmatprep.subr.mxu0 0.0
    %734 = vmatpush1.msra.mxu0 %v617
    %735 = vmatprep.subr.mxu0 0.0
    %736 = vmatpush1.msra.mxu0 %v618
    %737 = vmatprep.subr.mxu0 0.0
    %738 = vmatpush1.msra.mxu0 %v619
    %739 = vmatprep.subr.mxu0 0.0
    %740 = vmatpush1.msra.mxu0 %v620
    %741 = vmatprep.subr.mxu0 0.0
    %742 = vmatpush1.msra.mxu0 %v621
    %743 = vmatprep.subr.mxu0 0.0
    %744 = vmatpush1.msra.mxu0 %v622
    %745 = vmatprep.subr.mxu0 0.0
    %746 = vmatpush1.msra.mxu0 %v623
    %747 = vmatprep.subr.mxu0 0.0
    %748 = vmatpush1.msra.mxu0 %v624
    %749 = vmatprep.subr.mxu0 0.0
    %750 = vmatpush1.msra.mxu0 %v625
    %751 = vmatprep.subr.mxu0 0.0
    %752 = vmatpush1.msra.mxu0 %v626
    %753 = vmatprep.subr.mxu0 0.0
    %754 = vmatpush1.msra.mxu0 %v627
    %755 = vmatprep.subr.mxu0 0.0
    %756 = vmatpush1.msra.mxu0 %v628
    %757 = vmatprep.subr.mxu0 0.0
    %758 = vmatpush1.msra.mxu0 %v629
    %759 = vmatprep.subr.mxu0 0.0
    %760 = vmatpush1.msra.mxu0 %v630
    %761 = vmatprep.subr.mxu0 0.0
    %762 = vmatpush1.msra.mxu0 %v631
    %763 = vmatprep.subr.mxu0 0.0
    %764 = vmatpush1.msra.mxu0 %v632
    %765 = vmatprep.subr.mxu0 0.0
    %766 = vmatpush1.msra.mxu0 %v633
    %767 = vmatprep.subr.mxu0 0.0
    %768 = vmatpush1.msra.mxu0 %v634
    %769 = vmatprep.subr.mxu0 0.0
    %770 = vmatpush1.msra.mxu0 %v635
    %771 = vmatprep.subr.mxu0 0.0
    %772 = vmatpush1.msra.mxu0 %v636
    %773 = vmatprep.subr.mxu0 0.0
    %774 = vmatpush1.msra.mxu0 %v637
    %775 = vmatprep.subr.mxu0 0.0
    %776 = vmatpush1.msra.mxu0 %v638
    %777 = vmatprep.subr.mxu0 0.0
    %778 = vmatpush1.msra.mxu0 %v639
    %779 = vmatprep.subr.mxu0 0.0
    %780 = vmatpush1.msra.mxu0 %v640
    %781 = vmatprep.subr.mxu0 0.0
    %782 = vmatpush1.msra.mxu0 %v641
    %783 = vmatprep.mubr.f32.mxu0 %v577
    %784 = vmatmul.mubr.f32.gmra.mrb[0].mxu0 %v576
    %v785 = vpop.f32.mrb[0].mxu0
    %v786 = vadd.f32 %v716, %v785
    %v787 = vpop.f32.mrb[0].mxu0
    %788 = vdwg.mxu0
    %v789 = vmax.f32 %v786, 0.0
    %v790 = vld [vmem:[#allocation7] sm:$0xff]
    %v791 = vld [vmem:[#allocation7 + $0x8] sm:$0xff]
    %v792 = vld [vmem:[#allocation7 + $0x10] sm:$0xff]
    %v793 = vld [vmem:[#allocation7 + $0x18] sm:$0xff]
    %v794 = vld [vmem:[#allocation7 + $0x20] sm:$0xff]
    %v795 = vld [vmem:[#allocation7 + $0x28] sm:$0xff]
    %v796 = vld [vmem:[#allocation7 + $0x30] sm:$0xff]
    %v797 = vld [vmem:[#allocation7 + $0x38] sm:$0xff]
    %v798 = vld [vmem:[#allocation7 + $0x40] sm:$0xff]
    %v799 = vld [vmem:[#allocation7 + $0x48] sm:$0xff]
    %v800 = vld [vmem:[#allocation7 + $0x50] sm:$0xff]
    %v801 = vld [vmem:[#allocation7 + $0x58] sm:$0xff]
    %v802 = vld [vmem:[#allocation7 + $0x60] sm:$0xff]
    %v803 = vld [vmem:[#allocation7 + $0x68] sm:$0xff]
    %v804 = vld [vmem:[#allocation7 + $0x70] sm:$0xff]
    %v805 = vld [vmem:[#allocation7 + $0x78] sm:$0xff]
    %v806 = vld [vmem:[#allocation7 + $0x80] sm:$0xff]
    %v807 = vld [vmem:[#allocation7 + $0x88] sm:$0xff]
    %v808 = vld [vmem:[#allocation7 + $0x90] sm:$0xff]
    %v809 = vld [vmem:[#allocation7 + $0x98] sm:$0xff]
    %v810 = vld [vmem:[#allocation7 + $0xa0] sm:$0xff]
    %v811 = vld [vmem:[#allocation7 + $0xa8] sm:$0xff]
    %v812 = vld [vmem:[#allocation7 + $0xb0] sm:$0xff]
    %v813 = vld [vmem:[#allocation7 + $0xb8] sm:$0xff]
    %v814 = vld [vmem:[#allocation7 + $0xc0] sm:$0xff]
    %v815 = vld [vmem:[#allocation7 + $0xc8] sm:$0xff]
    %v816 = vld [vmem:[#allocation7 + $0xd0] sm:$0xff]
    %v817 = vld [vmem:[#allocation7 + $0xd8] sm:$0xff]
    %v818 = vld [vmem:[#allocation7 + $0xe0] sm:$0xff]
    %v819 = vld [vmem:[#allocation7 + $0xe8] sm:$0xff]
    %v820 = vld [vmem:[#allocation7 + $0xf0] sm:$0xff]
    %v821 = vld [vmem:[#allocation7 + $0xf8] sm:$0xff]
    %v822 = vld [vmem:[%s7] sm:$0x3]
    %v824 = vlaneseq
    %v825 = vshrl.u32 %v824, 7
    %v826 = vsub.s32 0, %v825
    %v827 = vrot.slane %v822, %v826
    %v828 = vlaneseq
    %v829 = vshrl.u32 %v828, 7
    %v830 = vsub.s32 1, %v829
    %v831 = vrot.slane %v822, %v830
    %834 = vmatprep.subr.mxu0 %v791
    %835 = vmatpush1.msra.mxu0 %v790
    %836 = vmatprep.subr.mxu0 %v793
    %837 = vmatpush1.msra.mxu0 %v792
    %838 = vmatprep.subr.mxu0 %v795
    %839 = vmatpush1.msra.mxu0 %v794
    %840 = vmatprep.subr.mxu0 %v797
    %841 = vmatpush1.msra.mxu0 %v796
    %842 = vmatprep.subr.mxu0 %v799
    %843 = vmatpush1.msra.mxu0 %v798
    %844 = vmatprep.subr.mxu0 %v801
    %845 = vmatpush1.msra.mxu0 %v800
    %846 = vmatprep.subr.mxu0 %v803
    %847 = vmatpush1.msra.mxu0 %v802
    %848 = vmatprep.subr.mxu0 %v805
    %849 = vmatpush1.msra.mxu0 %v804
    %850 = vmatprep.subr.mxu0 %v807
    %851 = vmatpush1.msra.mxu0 %v806
    %852 = vmatprep.subr.mxu0 %v809
    %853 = vmatpush1.msra.mxu0 %v808
    %854 = vmatprep.subr.mxu0 %v811
    %855 = vmatpush1.msra.mxu0 %v810
    %856 = vmatprep.subr.mxu0 %v813
    %857 = vmatpush1.msra.mxu0 %v812
    %858 = vmatprep.subr.mxu0 %v815
    %859 = vmatpush1.msra.mxu0 %v814
    %860 = vmatprep.subr.mxu0 %v817
    %861 = vmatpush1.msra.mxu0 %v816
    %862 = vmatprep.subr.mxu0 %v819
    %863 = vmatpush1.msra.mxu0 %v818
    %864 = vmatprep.subr.mxu0 %v821
    %865 = vmatpush1.msra.mxu0 %v820
    %866 = vmatprep.subr.mxu0 0.0
    %867 = vmatpush1.msra.mxu0 0.0
    %868 = vmatprep.subr.mxu0 0.0
    %869 = vmatpush1.msra.mxu0 0.0
    %870 = vmatprep.subr.mxu0 0.0
    %871 = vmatpush1.msra.mxu0 0.0
    %872 = vmatprep.subr.mxu0 0.0
    %873 = vmatpush1.msra.mxu0 0.0
    %874 = vmatprep.subr.mxu0 0.0
    %875 = vmatpush1.msra.mxu0 0.0
    %876 = vmatprep.subr.mxu0 0.0
    %877 = vmatpush1.msra.mxu0 0.0
    %878 = vmatprep.subr.mxu0 0.0
    %879 = vmatpush1.msra.mxu0 0.0
    %880 = vmatprep.subr.mxu0 0.0
    %881 = vmatpush1.msra.mxu0 0.0
    %882 = vmatprep.subr.mxu0 0.0
    %883 = vmatpush1.msra.mxu0 0.0
    %884 = vmatprep.subr.mxu0 0.0
    %885 = vmatpush1.msra.mxu0 0.0
    %886 = vmatprep.subr.mxu0 0.0
    %887 = vmatpush1.msra.mxu0 0.0
    %888 = vmatprep.subr.mxu0 0.0
    %889 = vmatpush1.msra.mxu0 0.0
    %890 = vmatprep.subr.mxu0 0.0
    %891 = vmatpush1.msra.mxu0 0.0
    %892 = vmatprep.subr.mxu0 0.0
    %893 = vmatpush1.msra.mxu0 0.0
    %894 = vmatprep.subr.mxu0 0.0
    %895 = vmatpush1.msra.mxu0 0.0
    %896 = vmatprep.subr.mxu0 0.0
    %897 = vmatpush1.msra.mxu0 0.0
    %898 = vmatprep.mubr.f32.mxu0 0.0
    %899 = vmatmul.mubr.f32.gmra.mrb[0].mxu0 %v789
    %v900 = vpop.f32.mrb[0].mxu0
    %v901 = vadd.f32 %v827, %v900
    %v902 = vpop.f32.mrb[0].mxu0
    %v903 = vadd.f32 %v831, %v902
    %904 = vdwg.mxu0
    %v907 = vcombine.low %v901, %v903
    %v909 = vunpack.c.l.s4 1983009808
    %v910 = vunpack.c.0.s8 %v909
    %v911 = vlaneseq
    %v912 = vshrl.u32 %v911, 7
    %v913 = vsub.s32 %v910, %v912
    %v914 = vrot.slane %v907, %v913
    %916 = vst [vmem:[#allocation8] sm:$0xf] %v914
    // Predicated region
    $region46: #{convdip_forward.1} parent=1 // pred_check
      _
    $region47: #{convdip_forward.1} parent=1 // pred_check_branch
      %918 = sbr.rel (0) target = $region49
    $region48: #{convdip_forward.1} parent=1 // pred_region
      %s920 = ssub.s32 64, 64
      %921 = vsyncadd [#allocation4], %s920
      %s923 = sshll.u32 [#allocation8], 4
      %s924 = int_to_ptr.vmem [resolvable:$true] %s923
      %926 = dma.vmem_to_hbm [thread:$0]  %s924, 64, %s8, [#allocation4]
    $region49: #{convdip_forward.1} parent=1 // pred_fallthru
      _
    // Predicated region
    $region50: #{convdip_forward.1} parent=1 // pred_check
      _
    $region51: #{convdip_forward.1} parent=1 // pred_check_branch
      %928 = sbr.rel (0) target = $region53
    $region52: #{convdip_forward.1} parent=1 // pred_region
      %929 = dma.done [#allocation4], 64
    $region53: #{convdip_forward.1} parent=1 // pred_fallthru
      _
    %930 = vsyncpa [#allocation3], 1
    %931 = vsyncpa [#allocation6], 1
    %932 = vsyncpa [#allocation4], 1

</llo_original>
